<compile_context>
chip_gen: v5e
topology: v5e:2x2
jax: 0.10.0
libtpu: 0.0.40
codegen_flags: <defaults>
</compile_context>

<pallas_src>
import jax
import jax.numpy as jnp
from jax.experimental import pallas as pl
from jax.experimental.pallas import tpu as pltpu

IN_F, H1, H2, OUT_F = 4, 128, 64, 1
DEFAULT_TILE_B = 2048  # primary tuning knob; sweep 512-8192 on real workloads


def _round_up(n, m):
    return ((n + m - 1) // m) * m


def mlp_kernel(x_ref, w1_ref, b1_ref, w2_ref, b2_ref, w3_ref, b3_ref, o_ref):
    # x_ref: (IN_F, TILE_B) bf16   w1_ref: (H1, IN_F) bf16   b1_ref: (H1, 1) f32
    # w2_ref: (H2, H1) bf16        b2_ref: (H2, 1) f32
    # w3_ref: (H2, 1) f32          b3_ref: (1,) f32 in SMEM
    # o_ref : (1, TILE_B) f32
    x = x_ref[...].astype(jnp.float32)      # (IN_F, TILE_B)
    w1 = w1_ref[...].astype(jnp.float32)    # (H1, IN_F)

    # ---- Layer 1: K=4 contraction as 4 VPU outer-product FMAs (MXU would pad K
    # to 128/256 and waste a full pass). f32 accumulate.
    h1 = b1_ref[...] + w1[:, 0:1] * x[0:1, :]          # (H1, TILE_B)
    for k in range(1, IN_F):                            # static unroll (3 FMAs)
        h1 = h1 + w1[:, k : k + 1] * x[k : k + 1, :]
    h1 = jnp.maximum(h1, 0.0)                           # ReLU

    # ---- Layer 2: the only real matmul, bf16 on the MXU with f32 accumulation.
    h2 = (
        jnp.dot(w2_ref[...], h1.astype(jnp.bfloat16),
                preferred_element_type=jnp.float32)
        + b2_ref[...]
    )                                                   # (H2, TILE_B)
    h2 = jnp.maximum(h2, 0.0)                           # ReLU

    # ---- Layer 3: N=1 -> VPU multiply + sublane (XLU) reduction, lane-dense out.
    # (No activation after fc3, matching the PyTorch module.)
    out = jnp.sum(h2 * w3_ref[...], axis=0, keepdims=True) + b3_ref[0]  # (1, TILE_B)
    o_ref[...] = out.astype(o_ref.dtype)


def height_prediction_forward(x, params, *, tile_b=DEFAULT_TILE_B):
    """x: (B, 4) f32; params in PyTorch layout (W: (out,in), b: (out,)). Returns (B, 1) f32."""
    w1, b1, w2, b2, w3, b3 = params
    B = x.shape[0]
    assert x.shape[1] == IN_F

    b_pad = _round_up(B, 128)
    tile = _round_up(min(tile_b, b_pad), 128)  # lane-dense tiles, multiple of 128
    b_pad = _round_up(b_pad, tile)
    grid = (b_pad // tile,)

    # Kernel-layout operands (transposed data flow, bf16 activations/weights).
    xt = jnp.zeros((IN_F, b_pad), jnp.bfloat16).at[:, :B].set(
        x.T.astype(jnp.bfloat16)
    )
    w1k = w1.astype(jnp.bfloat16)                       # (H1, IN_F)
    b1k = b1.reshape(H1, 1).astype(jnp.float32)
    w2k = w2.astype(jnp.bfloat16)                       # (H2, H1)
    b2k = b2.reshape(H2, 1).astype(jnp.float32)
    w3k = w3.reshape(OUT_F, H2).T.astype(jnp.float32)   # (H2, 1)
    b3k = b3.reshape(OUT_F).astype(jnp.float32)         # (1,) scalar -> SMEM

    full = lambda i: (0, 0)  # constant block index => fetched once, stays in VMEM

    out = pl.pallas_call(
        mlp_kernel,
        out_shape=jax.ShapeDtypeStruct((1, b_pad), jnp.float32),
        grid_spec=pltpu.PrefetchScalarGridSpec(
            num_scalar_prefetch=0,
            grid=grid,
            in_specs=[
                pl.BlockSpec((IN_F, tile), lambda i: (0, i)),            # x^T tile
                pl.BlockSpec((H1, IN_F), full),                          # w1
                pl.BlockSpec((H1, 1), full),                             # b1
                pl.BlockSpec((H2, H1), full),                            # w2
                pl.BlockSpec((H2, 1), full),                             # b2
                pl.BlockSpec((H2, 1), full),                             # w3 (as column)
                pl.BlockSpec(memory_space=pltpu.MemorySpace.SMEM),       # b3 scalar
            ],
            out_specs=pl.BlockSpec((1, tile), lambda i: (0, i)),         # lane-dense
        ),
        compiler_params=pltpu.CompilerParams(
            dimension_semantics=("parallel",),
        ),
    )(xt, w1k, b1k, w2k, b2k, w3k, b3k)

    return out[0, :B].reshape(B, OUT_F)


def init_params(key):
    """Deterministic init mimicking nn.Linear (uniform +/- 1/sqrt(fan_in)), PyTorch layout."""
    def linear(key, fan_in, fan_out):
        kw, kb = jax.random.split(key)
        bound = 1.0 / (fan_in ** 0.5)
        w = jax.random.uniform(kw, (fan_out, fan_in), jnp.float32, -bound, bound)
        b = jax.random.uniform(kb, (fan_out,), jnp.float32, -bound, bound)
        return w, b

    k1, k2, k3 = jax.random.split(key, 3)
    w1, b1 = linear(k1, IN_F, H1)
    w2, b2 = linear(k2, H1, H2)
    w3, b3 = linear(k3, H2, OUT_F)
    return (w1, b1, w2, b2, w3, b3)


def reference_forward(x, params):
    """Pure-JAX reference mirroring the kernel's bf16-input / f32-accumulate precision."""
    w1, b1, w2, b2, w3, b3 = params
    xf = x.astype(jnp.bfloat16).astype(jnp.float32)
    w1f = w1.astype(jnp.bfloat16).astype(jnp.float32)
    h1 = jnp.maximum(xf @ w1f.T + b1, 0.0)
    h2 = (
        jnp.dot(h1.astype(jnp.bfloat16), w2.astype(jnp.bfloat16).T,
                preferred_element_type=jnp.float32)
        + b2
    )
    h2 = jnp.maximum(h2, 0.0)
    return h2 @ w3.T + b3


if __name__ == "__main__":
    key = jax.random.PRNGKey(0)
    kx, kp = jax.random.split(key)

    B = 200  # small batch, not a multiple of 128 -> exercises padding
    x = jax.random.normal(kx, (B, IN_F), dtype=jnp.float32)
    params = init_params(kp)

    # Default (single fat tile) path.
    out = jax.block_until_ready(height_prediction_forward(x, params))
    # Forced multi-step grid path (tile_b=128 -> 2 grid steps) to exercise tiling.
    out_tiled = jax.block_until_ready(
        height_prediction_forward(x, params, tile_b=128)
    )
    ref = reference_forward(x, params)

    assert out.shape == (B, OUT_F)
    assert out_tiled.shape == (B, OUT_F)
    assert jnp.allclose(out, ref, atol=5e-3, rtol=5e-3), "mismatch vs JAX reference"
    assert jnp.allclose(out_tiled, ref, atol=5e-3, rtol=5e-3), "tiled mismatch vs JAX reference"

    print("KERNEL_OK")
</pallas_src>

<mosaic_0001>
module attributes {stable_mosaic.version = 11 : i64} {
  func.func @mlp_kernel(%arg0: i32, %arg1: memref<4x256xbf16, #tpu.memory_space<vmem>>, %arg2: memref<128x4xbf16, #tpu.memory_space<vmem>>, %arg3: memref<128x1xf32, #tpu.memory_space<vmem>>, %arg4: memref<64x128xbf16, #tpu.memory_space<vmem>>, %arg5: memref<64x1xf32, #tpu.memory_space<vmem>>, %arg6: memref<64x1xf32, #tpu.memory_space<vmem>>, %arg7: memref<1xf32, #tpu.memory_space<smem>>, %arg8: memref<1x256xf32, #tpu.memory_space<vmem>>) attributes {dimension_semantics = [#tpu.dimension_semantics<parallel>], iteration_bounds = array<i64: 1>, scalar_prefetch = 0 : i64, scratch_operands = 0 : i64, tpu.core_type = #tpu.core_type<tc>, window_params = [{transform_indices = @transform_0, window_bounds = array<i64: 4, 256>}, {pipeline_mode = #tpu.pipeline_mode<synchronous>, transform_indices = @transform_1, window_bounds = array<i64: 128, 4>}, {pipeline_mode = #tpu.pipeline_mode<synchronous>, transform_indices = @transform_2, window_bounds = array<i64: 128, 1>}, {pipeline_mode = #tpu.pipeline_mode<synchronous>, transform_indices = @transform_3, window_bounds = array<i64: 64, 128>}, {pipeline_mode = #tpu.pipeline_mode<synchronous>, transform_indices = @transform_4, window_bounds = array<i64: 64, 1>}, {pipeline_mode = #tpu.pipeline_mode<synchronous>, transform_indices = @transform_5, window_bounds = array<i64: 64, 1>}, {transform_indices = @transform_6, window_bounds = array<i64: 1>}, {transform_indices = @transform_7, window_bounds = array<i64: 1, 256>}]} {
    %c0 = arith.constant 0 : index
    %c0_0 = arith.constant 0 : index
    %0 = vector.load %arg1[%c0, %c0_0] : memref<4x256xbf16, #tpu.memory_space<vmem>>, vector<4x256xbf16>
    %1 = arith.extf %0 : vector<4x256xbf16> to vector<4x256xf32>
    %c0_1 = arith.constant 0 : index
    %c0_2 = arith.constant 0 : index
    %2 = vector.load %arg2[%c0_1, %c0_2] : memref<128x4xbf16, #tpu.memory_space<vmem>>, vector<128x4xbf16>
    %3 = arith.extf %2 : vector<128x4xbf16> to vector<128x4xf32>
    %c0_3 = arith.constant 0 : index
    %c0_4 = arith.constant 0 : index
    %4 = vector.load %arg3[%c0_3, %c0_4] : memref<128x1xf32, #tpu.memory_space<vmem>>, vector<128x1xf32>
    %5 = vector.extract_strided_slice %3 {offsets = [0, 0], sizes = [128, 1], strides = [1, 1]} : vector<128x4xf32> to vector<128x1xf32>
    %6 = vector.extract_strided_slice %1 {offsets = [0, 0], sizes = [1, 256], strides = [1, 1]} : vector<4x256xf32> to vector<1x256xf32>
    %7 = vector.broadcast %5 : vector<128x1xf32> to vector<128x256xf32>
    %8 = vector.broadcast %6 : vector<1x256xf32> to vector<128x256xf32>
    %9 = arith.mulf %7, %8 : vector<128x256xf32>
    %10 = vector.broadcast %4 : vector<128x1xf32> to vector<128x256xf32>
    %11 = arith.addf %10, %9 : vector<128x256xf32>
    %12 = vector.extract_strided_slice %3 {offsets = [0, 1], sizes = [128, 1], strides = [1, 1]} : vector<128x4xf32> to vector<128x1xf32>
    %13 = vector.extract_strided_slice %1 {offsets = [1, 0], sizes = [1, 256], strides = [1, 1]} : vector<4x256xf32> to vector<1x256xf32>
    %14 = vector.broadcast %12 : vector<128x1xf32> to vector<128x256xf32>
    %15 = vector.broadcast %13 : vector<1x256xf32> to vector<128x256xf32>
    %16 = arith.mulf %14, %15 : vector<128x256xf32>
    %17 = arith.addf %11, %16 : vector<128x256xf32>
    %18 = vector.extract_strided_slice %3 {offsets = [0, 2], sizes = [128, 1], strides = [1, 1]} : vector<128x4xf32> to vector<128x1xf32>
    %19 = vector.extract_strided_slice %1 {offsets = [2, 0], sizes = [1, 256], strides = [1, 1]} : vector<4x256xf32> to vector<1x256xf32>
    %20 = vector.broadcast %18 : vector<128x1xf32> to vector<128x256xf32>
    %21 = vector.broadcast %19 : vector<1x256xf32> to vector<128x256xf32>
    %22 = arith.mulf %20, %21 : vector<128x256xf32>
    %23 = arith.addf %17, %22 : vector<128x256xf32>
    %24 = vector.extract_strided_slice %3 {offsets = [0, 3], sizes = [128, 1], strides = [1, 1]} : vector<128x4xf32> to vector<128x1xf32>
    %25 = vector.extract_strided_slice %1 {offsets = [3, 0], sizes = [1, 256], strides = [1, 1]} : vector<4x256xf32> to vector<1x256xf32>
    %26 = vector.broadcast %24 : vector<128x1xf32> to vector<128x256xf32>
    %27 = vector.broadcast %25 : vector<1x256xf32> to vector<128x256xf32>
    %28 = arith.mulf %26, %27 : vector<128x256xf32>
    %29 = arith.addf %23, %28 : vector<128x256xf32>
    %cst = arith.constant 0.000000e+00 : f32
    %30 = vector.broadcast %cst : f32 to vector<128x256xf32>
    %31 = arith.maximumf %29, %30 : vector<128x256xf32>
    %c0_5 = arith.constant 0 : index
    %c0_6 = arith.constant 0 : index
    %32 = vector.load %arg4[%c0_5, %c0_6] : memref<64x128xbf16, #tpu.memory_space<vmem>>, vector<64x128xbf16>
    %33 = arith.truncf %31 : vector<128x256xf32> to vector<128x256xbf16>
    %cst_7 = arith.constant dense<0.000000e+00> : vector<64x256xf32>
    %34 = tpu.matmul %32, %33, %cst_7 {dimension_numbers = #tpu.dot_dimension_numbers<[1], [0], [0], [1], [0, 0, 1, 1], [], []>} : vector<64x128xbf16>, vector<128x256xbf16>, vector<64x256xf32> -> vector<64x256xf32>
    %c0_8 = arith.constant 0 : index
    %c0_9 = arith.constant 0 : index
    %35 = vector.load %arg5[%c0_8, %c0_9] : memref<64x1xf32, #tpu.memory_space<vmem>>, vector<64x1xf32>
    %36 = vector.broadcast %35 : vector<64x1xf32> to vector<64x256xf32>
    %37 = arith.addf %34, %36 : vector<64x256xf32>
    %cst_10 = arith.constant 0.000000e+00 : f32
    %38 = vector.broadcast %cst_10 : f32 to vector<64x256xf32>
    %39 = arith.maximumf %37, %38 : vector<64x256xf32>
    %c0_11 = arith.constant 0 : index
    %c0_12 = arith.constant 0 : index
    %40 = vector.load %arg6[%c0_11, %c0_12] : memref<64x1xf32, #tpu.memory_space<vmem>>, vector<64x1xf32>
    %41 = vector.broadcast %40 : vector<64x1xf32> to vector<64x256xf32>
    %42 = arith.mulf %39, %41 : vector<64x256xf32>
    %cst_13 = arith.constant dense<0.000000e+00> : vector<256xf32>
    %43 = vector.multi_reduction <add>, %42, %cst_13 [0] : vector<64x256xf32> to vector<256xf32>
    %44 = vector.shape_cast %43 : vector<256xf32> to vector<1x256xf32>
    %c0_14 = arith.constant 0 : index
    %45 = memref.load %arg7[%c0_14] : memref<1xf32, #tpu.memory_space<smem>>
    %46 = vector.broadcast %45 : f32 to vector<1x256xf32>
    %47 = arith.addf %44, %46 : vector<1x256xf32>
    %c0_15 = arith.constant 0 : index
    %c0_16 = arith.constant 0 : index
    %48 = vector.load %arg8[%c0_15, %c0_16] : memref<1x256xf32, #tpu.memory_space<vmem>>, vector<1x256xf32>
    tpu.vector_store %arg8[%c0_15, %c0_16], %47 {strides = array<i32>} : memref<1x256xf32, #tpu.memory_space<vmem>>, vector<1x256xf32>,
    return
  }
  func.func @transform_0(%arg0: i32) -> (i32, i32) {
    %c0_i32 = arith.constant 0 : i32
    %c0_i32_0 = arith.constant 0 : i32
    return %c0_i32, %arg0 : i32, i32
  }
  func.func @transform_1(%arg0: i32) -> (i32, i32) {
    %c0_i32 = arith.constant 0 : i32
    %c0_i32_0 = arith.constant 0 : i32
    %c0_i32_1 = arith.constant 0 : i32
    return %c0_i32, %c0_i32_0 : i32, i32
  }
  func.func @transform_2(%arg0: i32) -> (i32, i32) {
    %c0_i32 = arith.constant 0 : i32
    %c0_i32_0 = arith.constant 0 : i32
    %c0_i32_1 = arith.constant 0 : i32
    return %c0_i32, %c0_i32_0 : i32, i32
  }
  func.func @transform_3(%arg0: i32) -> (i32, i32) {
    %c0_i32 = arith.constant 0 : i32
    %c0_i32_0 = arith.constant 0 : i32
    %c0_i32_1 = arith.constant 0 : i32
    return %c0_i32, %c0_i32_0 : i32, i32
  }
  func.func @transform_4(%arg0: i32) -> (i32, i32) {
    %c0_i32 = arith.constant 0 : i32
    %c0_i32_0 = arith.constant 0 : i32
    %c0_i32_1 = arith.constant 0 : i32
    return %c0_i32, %c0_i32_0 : i32, i32
  }
  func.func @transform_5(%arg0: i32) -> (i32, i32) {
    %c0_i32 = arith.constant 0 : i32
    %c0_i32_0 = arith.constant 0 : i32
    %c0_i32_1 = arith.constant 0 : i32
    return %c0_i32, %c0_i32_0 : i32, i32
  }
  func.func @transform_6(%arg0: i32) -> i32 {
    %c0_i32 = arith.constant 0 : i32
    %c0_i32_0 = arith.constant 0 : i32
    return %c0_i32 : i32
  }
  func.func @transform_7(%arg0: i32) -> (i32, i32) {
    %c0_i32 = arith.constant 0 : i32
    %c0_i32_0 = arith.constant 0 : i32
    return %c0_i32, %arg0 : i32, i32
  }
}

</mosaic_0001>

<llo_original>
// kernel: tpu_custom_call.1
$region0: #{tpu_custom_call.1}
  #allocation0 [shape = 'u32[]', space=smem, size = 0x4, offset = 0x4, fixed_abs, tag = 'smem constant byte address 0x4 - core index']
  #allocation1 [shape = 'u32[72,128]{1,0:T(1,128)}', space=vmem, size = 0x9000, scoped, tag = 'internal scratch']
  #allocation2 [shape = 'f32[1]{0:T(128)S(6)}', space=smem, size = 0x200, scoped, tag = 'scoped memory for tpu_custom_call.1']
  %s0 = inlined_call_operand.vmem [shape: bf16[4,256], index: 0, kind: input, shape index: {}]
  %s1 = inlined_call_operand.vmem [shape: bf16[128,4], index: 1, kind: input, shape index: {}]
  %s2 = inlined_call_operand.vmem [shape: f32[128,1], index: 2, kind: input, shape index: {}]
  %s3 = inlined_call_operand.vmem [shape: bf16[64,128], index: 3, kind: input, shape index: {}]
  %s4 = inlined_call_operand.vmem [shape: f32[64,1], index: 4, kind: input, shape index: {}]
  %s5 = inlined_call_operand.vmem [shape: f32[64,1], index: 5, kind: input, shape index: {}]
  %s6 = inlined_call_operand.<no memory space> [shape: f32[1], index: 6, kind: input, shape index: {}]
  %s7 = inlined_call_operand.hbm [shape: f32[1,256], index: 7, kind: output, shape index: {}]
  %s8 = sld [smem:[#allocation0]]
  $region38: #{tpu_custom_call.1} parent=0
    _
  %s10 = ssub.s32 1, %s8
  %s11 = scalar_select 0, %s10, %s8
  %12 = sst [smem:[#allocation2]] %s6
  $region1: #{tpu_custom_call.1} parent=0
    #allocation3 [shape = 'u8[1024]{0}', space=vmem, size = 0x400, scoped, tag = 'output window, operand 0, single buffered']
    #allocation4 [shape = 's32[1]{0}', space=sflag, size = 0x4, scoped, tag = 'scoped memory for tpu_custom_call.1']
    %13 = vsyncpa [#allocation4], 0
    // Predicated region
    $region2: #{tpu_custom_call.1} parent=1 // pred_check
      _
    $region3: #{tpu_custom_call.1} parent=1 // pred_check_branch
      %15 = sbr.rel (0) target = $region5
    $region4: #{tpu_custom_call.1} parent=1 // pred_region
      _
    $region5: #{tpu_custom_call.1} parent=1 // pred_fallthru
      _
    // Predicated region
    $region6: #{tpu_custom_call.1} parent=1 // pred_check
      _
    $region7: #{tpu_custom_call.1} parent=1 // pred_check_branch
      %17 = sbr.rel (0) target = $region9
    $region8: #{tpu_custom_call.1} parent=1 // pred_region
      _
    $region9: #{tpu_custom_call.1} parent=1 // pred_fallthru
      _
    // Predicated region
    $region10: #{tpu_custom_call.1} parent=1 // pred_check
      _
    $region11: #{tpu_custom_call.1} parent=1 // pred_check_branch
      %19 = sbr.rel (0) target = $region13
    $region12: #{tpu_custom_call.1} parent=1 // pred_region
      _
    $region13: #{tpu_custom_call.1} parent=1 // pred_fallthru
      _
    // Predicated region
    $region14: #{tpu_custom_call.1} parent=1 // pred_check
      _
    $region15: #{tpu_custom_call.1} parent=1 // pred_check_branch
      %21 = sbr.rel (0) target = $region17
    $region16: #{tpu_custom_call.1} parent=1 // pred_region
      _
    $region17: #{tpu_custom_call.1} parent=1 // pred_fallthru
      _
    // Predicated region
    $region18: #{tpu_custom_call.1} parent=1 // pred_check
      _
    $region19: #{tpu_custom_call.1} parent=1 // pred_check_branch
      %23 = sbr.rel (0) target = $region21
    $region20: #{tpu_custom_call.1} parent=1 // pred_region
      _
    $region21: #{tpu_custom_call.1} parent=1 // pred_fallthru
      _
    // Predicated region
    $region22: #{tpu_custom_call.1} parent=1 // pred_check
      _
    $region23: #{tpu_custom_call.1} parent=1 // pred_check_branch
      %25 = sbr.rel (0) target = $region25
    $region24: #{tpu_custom_call.1} parent=1 // pred_region
      _
    $region25: #{tpu_custom_call.1} parent=1 // pred_fallthru
      _
    // Predicated region
    $region26: #{tpu_custom_call.1} parent=1 // pred_check
      _
    $region27: #{tpu_custom_call.1} parent=1 // pred_check_branch
      %27 = sbr.rel (0) target = $region29
    $region28: #{tpu_custom_call.1} parent=1 // pred_region
      _
    $region29: #{tpu_custom_call.1} parent=1 // pred_fallthru
      _
    %v28 = vld [vmem:[%s0] sm:$0xf]
    %v29 = vunpack.c.l.bf16 %v28
    %v30 = vld [vmem:[%s1] sm:$0xf]
    %v31 = vld [vmem:[%s1 + $0x4] sm:$0xf]
    %v32 = vld [vmem:[%s1 + $0x8] sm:$0xf]
    %v33 = vld [vmem:[%s1 + $0xc] sm:$0xf]
    %v34 = vld [vmem:[%s1 + $0x10] sm:$0xf]
    %v35 = vld [vmem:[%s1 + $0x14] sm:$0xf]
    %v36 = vld [vmem:[%s1 + $0x18] sm:$0xf]
    %v37 = vld [vmem:[%s1 + $0x1c] sm:$0xf]
    %v38 = vld [vmem:[%s1 + $0x20] sm:$0xf]
    %v39 = vld [vmem:[%s1 + $0x24] sm:$0xf]
    %v40 = vld [vmem:[%s1 + $0x28] sm:$0xf]
    %v41 = vld [vmem:[%s1 + $0x2c] sm:$0xf]
    %v42 = vld [vmem:[%s1 + $0x30] sm:$0xf]
    %v43 = vld [vmem:[%s1 + $0x34] sm:$0xf]
    %v44 = vld [vmem:[%s1 + $0x38] sm:$0xf]
    %v45 = vld [vmem:[%s1 + $0x3c] sm:$0xf]
    %v46 = vunpack.c.l.bf16 %v30
    %v47 = vunpack.c.l.bf16 %v31
    %v48 = vunpack.c.l.bf16 %v32
    %v49 = vunpack.c.l.bf16 %v33
    %v50 = vunpack.c.l.bf16 %v34
    %v51 = vunpack.c.l.bf16 %v35
    %v52 = vunpack.c.l.bf16 %v36
    %v53 = vunpack.c.l.bf16 %v37
    %v54 = vunpack.c.l.bf16 %v38
    %v55 = vunpack.c.l.bf16 %v39
    %v56 = vunpack.c.l.bf16 %v40
    %v57 = vunpack.c.l.bf16 %v41
    %v58 = vunpack.c.l.bf16 %v42
    %v59 = vunpack.c.l.bf16 %v43
    %v60 = vunpack.c.l.bf16 %v44
    %v61 = vunpack.c.l.bf16 %v45
    %v62 = vld [vmem:[%s2] sm:$0xff]
    %v63 = vld [vmem:[%s2 + $0x8] sm:$0xff]
    %v64 = vld [vmem:[%s2 + $0x10] sm:$0xff]
    %v65 = vld [vmem:[%s2 + $0x18] sm:$0xff]
    %v66 = vld [vmem:[%s2 + $0x20] sm:$0xff]
    %v67 = vld [vmem:[%s2 + $0x28] sm:$0xff]
    %v68 = vld [vmem:[%s2 + $0x30] sm:$0xff]
    %v69 = vld [vmem:[%s2 + $0x38] sm:$0xff]
    %v70 = vld [vmem:[%s2 + $0x40] sm:$0xff]
    %v71 = vld [vmem:[%s2 + $0x48] sm:$0xff]
    %v72 = vld [vmem:[%s2 + $0x50] sm:$0xff]
    %v73 = vld [vmem:[%s2 + $0x58] sm:$0xff]
    %v74 = vld [vmem:[%s2 + $0x60] sm:$0xff]
    %v75 = vld [vmem:[%s2 + $0x68] sm:$0xff]
    %v76 = vld [vmem:[%s2 + $0x70] sm:$0xff]
    %v77 = vld [vmem:[%s2 + $0x78] sm:$0xff]
    %79 = vset.pattern.permute.xlu0 0
    %80 = vperm.xlu0 %79, %v46
    %v81 = vpop.permute.xlu0 %80
    %84 = vset.pattern.permute.xlu0 0
    %85 = vperm.xlu0 %84, %v47
    %v86 = vpop.permute.xlu0 %85
    %89 = vset.pattern.permute.xlu0 0
    %90 = vperm.xlu0 %89, %v48
    %v91 = vpop.permute.xlu0 %90
    %94 = vset.pattern.permute.xlu0 0
    %95 = vperm.xlu0 %94, %v49
    %v96 = vpop.permute.xlu0 %95
    %99 = vset.pattern.permute.xlu0 0
    %100 = vperm.xlu0 %99, %v50
    %v101 = vpop.permute.xlu0 %100
    %104 = vset.pattern.permute.xlu0 0
    %105 = vperm.xlu0 %104, %v51
    %v106 = vpop.permute.xlu0 %105
    %109 = vset.pattern.permute.xlu0 0
    %110 = vperm.xlu0 %109, %v52
    %v111 = vpop.permute.xlu0 %110
    %114 = vset.pattern.permute.xlu0 0
    %115 = vperm.xlu0 %114, %v53
    %v116 = vpop.permute.xlu0 %115
    %119 = vset.pattern.permute.xlu0 0
    %120 = vperm.xlu0 %119, %v54
    %v121 = vpop.permute.xlu0 %120
    %124 = vset.pattern.permute.xlu0 0
    %125 = vperm.xlu0 %124, %v55
    %v126 = vpop.permute.xlu0 %125
    %129 = vset.pattern.permute.xlu0 0
    %130 = vperm.xlu0 %129, %v56
    %v131 = vpop.permute.xlu0 %130
    %134 = vset.pattern.permute.xlu0 0
    %135 = vperm.xlu0 %134, %v57
    %v136 = vpop.permute.xlu0 %135
    %139 = vset.pattern.permute.xlu0 0
    %140 = vperm.xlu0 %139, %v58
    %v141 = vpop.permute.xlu0 %140
    %144 = vset.pattern.permute.xlu0 0
    %145 = vperm.xlu0 %144, %v59
    %v146 = vpop.permute.xlu0 %145
    %149 = vset.pattern.permute.xlu0 0
    %150 = vperm.xlu0 %149, %v60
    %v151 = vpop.permute.xlu0 %150
    %154 = vset.pattern.permute.xlu0 0
    %155 = vperm.xlu0 %154, %v61
    %v156 = vpop.permute.xlu0 %155
    %v159 = vperm.slane %v29, 0
    %v160 = vperm.slane %v29, 4
    %v163 = vperm.slane %v159, 0
    %v164 = vperm.slane %v160, 0
    %v165 = vmul.f32 %v81, %v163
    %v166 = vmul.f32 %v81, %v164
    %v167 = vmul.f32 %v86, %v163
    %v168 = vmul.f32 %v86, %v164
    %v169 = vmul.f32 %v91, %v163
    %v170 = vmul.f32 %v91, %v164
    %v171 = vmul.f32 %v96, %v163
    %v172 = vmul.f32 %v96, %v164
    %v173 = vmul.f32 %v101, %v163
    %v174 = vmul.f32 %v101, %v164
    %v175 = vmul.f32 %v106, %v163
    %v176 = vmul.f32 %v106, %v164
    %v177 = vmul.f32 %v111, %v163
    %v178 = vmul.f32 %v111, %v164
    %v179 = vmul.f32 %v116, %v163
    %v180 = vmul.f32 %v116, %v164
    %v181 = vmul.f32 %v121, %v163
    %v182 = vmul.f32 %v121, %v164
    %v183 = vmul.f32 %v126, %v163
    %v184 = vmul.f32 %v126, %v164
    %v185 = vmul.f32 %v131, %v163
    %v186 = vmul.f32 %v131, %v164
    %v187 = vmul.f32 %v136, %v163
    %v188 = vmul.f32 %v136, %v164
    %v189 = vmul.f32 %v141, %v163
    %v190 = vmul.f32 %v141, %v164
    %v191 = vmul.f32 %v146, %v163
    %v192 = vmul.f32 %v146, %v164
    %v193 = vmul.f32 %v151, %v163
    %v194 = vmul.f32 %v151, %v164
    %v195 = vmul.f32 %v156, %v163
    %v196 = vmul.f32 %v156, %v164
    %198 = vset.pattern.permute.xlu0 0
    %199 = vperm.xlu0 %198, %v62
    %v200 = vpop.permute.xlu0 %199
    %203 = vset.pattern.permute.xlu0 0
    %204 = vperm.xlu0 %203, %v63
    %v205 = vpop.permute.xlu0 %204
    %208 = vset.pattern.permute.xlu0 0
    %209 = vperm.xlu0 %208, %v64
    %v210 = vpop.permute.xlu0 %209
    %213 = vset.pattern.permute.xlu0 0
    %214 = vperm.xlu0 %213, %v65
    %v215 = vpop.permute.xlu0 %214
    %218 = vset.pattern.permute.xlu0 0
    %219 = vperm.xlu0 %218, %v66
    %v220 = vpop.permute.xlu0 %219
    %223 = vset.pattern.permute.xlu0 0
    %224 = vperm.xlu0 %223, %v67
    %v225 = vpop.permute.xlu0 %224
    %228 = vset.pattern.permute.xlu0 0
    %229 = vperm.xlu0 %228, %v68
    %v230 = vpop.permute.xlu0 %229
    %233 = vset.pattern.permute.xlu0 0
    %234 = vperm.xlu0 %233, %v69
    %v235 = vpop.permute.xlu0 %234
    %238 = vset.pattern.permute.xlu0 0
    %239 = vperm.xlu0 %238, %v70
    %v240 = vpop.permute.xlu0 %239
    %243 = vset.pattern.permute.xlu0 0
    %244 = vperm.xlu0 %243, %v71
    %v245 = vpop.permute.xlu0 %244
    %248 = vset.pattern.permute.xlu0 0
    %249 = vperm.xlu0 %248, %v72
    %v250 = vpop.permute.xlu0 %249
    %253 = vset.pattern.permute.xlu0 0
    %254 = vperm.xlu0 %253, %v73
    %v255 = vpop.permute.xlu0 %254
    %258 = vset.pattern.permute.xlu0 0
    %259 = vperm.xlu0 %258, %v74
    %v260 = vpop.permute.xlu0 %259
    %263 = vset.pattern.permute.xlu0 0
    %264 = vperm.xlu0 %263, %v75
    %v265 = vpop.permute.xlu0 %264
    %268 = vset.pattern.permute.xlu0 0
    %269 = vperm.xlu0 %268, %v76
    %v270 = vpop.permute.xlu0 %269
    %273 = vset.pattern.permute.xlu0 0
    %274 = vperm.xlu0 %273, %v77
    %v275 = vpop.permute.xlu0 %274
    %v277 = vadd.f32 %v200, %v165
    %v278 = vadd.f32 %v200, %v166
    %v279 = vadd.f32 %v205, %v167
    %v280 = vadd.f32 %v205, %v168
    %v281 = vadd.f32 %v210, %v169
    %v282 = vadd.f32 %v210, %v170
    %v283 = vadd.f32 %v215, %v171
    %v284 = vadd.f32 %v215, %v172
    %v285 = vadd.f32 %v220, %v173
    %v286 = vadd.f32 %v220, %v174
    %v287 = vadd.f32 %v225, %v175
    %v288 = vadd.f32 %v225, %v176
    %v289 = vadd.f32 %v230, %v177
    %v290 = vadd.f32 %v230, %v178
    %v291 = vadd.f32 %v235, %v179
    %v292 = vadd.f32 %v235, %v180
    %v293 = vadd.f32 %v240, %v181
    %v294 = vadd.f32 %v240, %v182
    %v295 = vadd.f32 %v245, %v183
    %v296 = vadd.f32 %v245, %v184
    %v297 = vadd.f32 %v250, %v185
    %v298 = vadd.f32 %v250, %v186
    %v299 = vadd.f32 %v255, %v187
    %v300 = vadd.f32 %v255, %v188
    %v301 = vadd.f32 %v260, %v189
    %v302 = vadd.f32 %v260, %v190
    %v303 = vadd.f32 %v265, %v191
    %v304 = vadd.f32 %v265, %v192
    %v305 = vadd.f32 %v270, %v193
    %v306 = vadd.f32 %v270, %v194
    %v307 = vadd.f32 %v275, %v195
    %v308 = vadd.f32 %v275, %v196
    %309 = vset.pattern.permute.xlu0 1
    %310 = vperm.xlu0 %309, %v46
    %v311 = vpop.permute.xlu0 %310
    %313 = vset.pattern.permute.xlu0 1
    %314 = vperm.xlu0 %313, %v47
    %v315 = vpop.permute.xlu0 %314
    %317 = vset.pattern.permute.xlu0 1
    %318 = vperm.xlu0 %317, %v48
    %v319 = vpop.permute.xlu0 %318
    %321 = vset.pattern.permute.xlu0 1
    %322 = vperm.xlu0 %321, %v49
    %v323 = vpop.permute.xlu0 %322
    %325 = vset.pattern.permute.xlu0 1
    %326 = vperm.xlu0 %325, %v50
    %v327 = vpop.permute.xlu0 %326
    %329 = vset.pattern.permute.xlu0 1
    %330 = vperm.xlu0 %329, %v51
    %v331 = vpop.permute.xlu0 %330
    %333 = vset.pattern.permute.xlu0 1
    %334 = vperm.xlu0 %333, %v52
    %v335 = vpop.permute.xlu0 %334
    %337 = vset.pattern.permute.xlu0 1
    %338 = vperm.xlu0 %337, %v53
    %v339 = vpop.permute.xlu0 %338
    %341 = vset.pattern.permute.xlu0 1
    %342 = vperm.xlu0 %341, %v54
    %v343 = vpop.permute.xlu0 %342
    %345 = vset.pattern.permute.xlu0 1
    %346 = vperm.xlu0 %345, %v55
    %v347 = vpop.permute.xlu0 %346
    %349 = vset.pattern.permute.xlu0 1
    %350 = vperm.xlu0 %349, %v56
    %v351 = vpop.permute.xlu0 %350
    %353 = vset.pattern.permute.xlu0 1
    %354 = vperm.xlu0 %353, %v57
    %v355 = vpop.permute.xlu0 %354
    %357 = vset.pattern.permute.xlu0 1
    %358 = vperm.xlu0 %357, %v58
    %v359 = vpop.permute.xlu0 %358
    %361 = vset.pattern.permute.xlu0 1
    %362 = vperm.xlu0 %361, %v59
    %v363 = vpop.permute.xlu0 %362
    %365 = vset.pattern.permute.xlu0 1
    %366 = vperm.xlu0 %365, %v60
    %v367 = vpop.permute.xlu0 %366
    %369 = vset.pattern.permute.xlu0 1
    %370 = vperm.xlu0 %369, %v61
    %v371 = vpop.permute.xlu0 %370
    %v373 = vperm.slane %v29, 1
    %v374 = vperm.slane %v29, 5
    %v377 = vperm.slane %v373, 1
    %v378 = vperm.slane %v374, 1
    %v379 = vmul.f32 %v311, %v377
    %v380 = vmul.f32 %v311, %v378
    %v381 = vmul.f32 %v315, %v377
    %v382 = vmul.f32 %v315, %v378
    %v383 = vmul.f32 %v319, %v377
    %v384 = vmul.f32 %v319, %v378
    %v385 = vmul.f32 %v323, %v377
    %v386 = vmul.f32 %v323, %v378
    %v387 = vmul.f32 %v327, %v377
    %v388 = vmul.f32 %v327, %v378
    %v389 = vmul.f32 %v331, %v377
    %v390 = vmul.f32 %v331, %v378
    %v391 = vmul.f32 %v335, %v377
    %v392 = vmul.f32 %v335, %v378
    %v393 = vmul.f32 %v339, %v377
    %v394 = vmul.f32 %v339, %v378
    %v395 = vmul.f32 %v343, %v377
    %v396 = vmul.f32 %v343, %v378
    %v397 = vmul.f32 %v347, %v377
    %v398 = vmul.f32 %v347, %v378
    %v399 = vmul.f32 %v351, %v377
    %v400 = vmul.f32 %v351, %v378
    %v401 = vmul.f32 %v355, %v377
    %v402 = vmul.f32 %v355, %v378
    %v403 = vmul.f32 %v359, %v377
    %v404 = vmul.f32 %v359, %v378
    %v405 = vmul.f32 %v363, %v377
    %v406 = vmul.f32 %v363, %v378
    %v407 = vmul.f32 %v367, %v377
    %v408 = vmul.f32 %v367, %v378
    %v409 = vmul.f32 %v371, %v377
    %v410 = vmul.f32 %v371, %v378
    %v411 = vadd.f32 %v277, %v379
    %v412 = vadd.f32 %v278, %v380
    %v413 = vadd.f32 %v279, %v381
    %v414 = vadd.f32 %v280, %v382
    %v415 = vadd.f32 %v281, %v383
    %v416 = vadd.f32 %v282, %v384
    %v417 = vadd.f32 %v283, %v385
    %v418 = vadd.f32 %v284, %v386
    %v419 = vadd.f32 %v285, %v387
    %v420 = vadd.f32 %v286, %v388
    %v421 = vadd.f32 %v287, %v389
    %v422 = vadd.f32 %v288, %v390
    %v423 = vadd.f32 %v289, %v391
    %v424 = vadd.f32 %v290, %v392
    %v425 = vadd.f32 %v291, %v393
    %v426 = vadd.f32 %v292, %v394
    %v427 = vadd.f32 %v293, %v395
    %v428 = vadd.f32 %v294, %v396
    %v429 = vadd.f32 %v295, %v397
    %v430 = vadd.f32 %v296, %v398
    %v431 = vadd.f32 %v297, %v399
    %v432 = vadd.f32 %v298, %v400
    %v433 = vadd.f32 %v299, %v401
    %v434 = vadd.f32 %v300, %v402
    %v435 = vadd.f32 %v301, %v403
    %v436 = vadd.f32 %v302, %v404
    %v437 = vadd.f32 %v303, %v405
    %v438 = vadd.f32 %v304, %v406
    %v439 = vadd.f32 %v305, %v407
    %v440 = vadd.f32 %v306, %v408
    %v441 = vadd.f32 %v307, %v409
    %v442 = vadd.f32 %v308, %v410
    %443 = vset.pattern.permute.xlu0 2
    %444 = vperm.xlu0 %443, %v46
    %v445 = vpop.permute.xlu0 %444
    %447 = vset.pattern.permute.xlu0 2
    %448 = vperm.xlu0 %447, %v47
    %v449 = vpop.permute.xlu0 %448
    %451 = vset.pattern.permute.xlu0 2
    %452 = vperm.xlu0 %451, %v48
    %v453 = vpop.permute.xlu0 %452
    %455 = vset.pattern.permute.xlu0 2
    %456 = vperm.xlu0 %455, %v49
    %v457 = vpop.permute.xlu0 %456
    %459 = vset.pattern.permute.xlu0 2
    %460 = vperm.xlu0 %459, %v50
    %v461 = vpop.permute.xlu0 %460
    %463 = vset.pattern.permute.xlu0 2
    %464 = vperm.xlu0 %463, %v51
    %v465 = vpop.permute.xlu0 %464
    %467 = vset.pattern.permute.xlu0 2
    %468 = vperm.xlu0 %467, %v52
    %v469 = vpop.permute.xlu0 %468
    %471 = vset.pattern.permute.xlu0 2
    %472 = vperm.xlu0 %471, %v53
    %v473 = vpop.permute.xlu0 %472
    %475 = vset.pattern.permute.xlu0 2
    %476 = vperm.xlu0 %475, %v54
    %v477 = vpop.permute.xlu0 %476
    %479 = vset.pattern.permute.xlu0 2
    %480 = vperm.xlu0 %479, %v55
    %v481 = vpop.permute.xlu0 %480
    %483 = vset.pattern.permute.xlu0 2
    %484 = vperm.xlu0 %483, %v56
    %v485 = vpop.permute.xlu0 %484
    %487 = vset.pattern.permute.xlu0 2
    %488 = vperm.xlu0 %487, %v57
    %v489 = vpop.permute.xlu0 %488
    %491 = vset.pattern.permute.xlu0 2
    %492 = vperm.xlu0 %491, %v58
    %v493 = vpop.permute.xlu0 %492
    %495 = vset.pattern.permute.xlu0 2
    %496 = vperm.xlu0 %495, %v59
    %v497 = vpop.permute.xlu0 %496
    %499 = vset.pattern.permute.xlu0 2
    %500 = vperm.xlu0 %499, %v60
    %v501 = vpop.permute.xlu0 %500
    %503 = vset.pattern.permute.xlu0 2
    %504 = vperm.xlu0 %503, %v61
    %v505 = vpop.permute.xlu0 %504
    %v507 = vperm.slane %v29, 2
    %v508 = vperm.slane %v29, 6
    %v511 = vperm.slane %v507, 2
    %v512 = vperm.slane %v508, 2
    %v513 = vmul.f32 %v445, %v511
    %v514 = vmul.f32 %v445, %v512
    %v515 = vmul.f32 %v449, %v511
    %v516 = vmul.f32 %v449, %v512
    %v517 = vmul.f32 %v453, %v511
    %v518 = vmul.f32 %v453, %v512
    %v519 = vmul.f32 %v457, %v511
    %v520 = vmul.f32 %v457, %v512
    %v521 = vmul.f32 %v461, %v511
    %v522 = vmul.f32 %v461, %v512
    %v523 = vmul.f32 %v465, %v511
    %v524 = vmul.f32 %v465, %v512
    %v525 = vmul.f32 %v469, %v511
    %v526 = vmul.f32 %v469, %v512
    %v527 = vmul.f32 %v473, %v511
    %v528 = vmul.f32 %v473, %v512
    %v529 = vmul.f32 %v477, %v511
    %v530 = vmul.f32 %v477, %v512
    %v531 = vmul.f32 %v481, %v511
    %v532 = vmul.f32 %v481, %v512
    %v533 = vmul.f32 %v485, %v511
    %v534 = vmul.f32 %v485, %v512
    %v535 = vmul.f32 %v489, %v511
    %v536 = vmul.f32 %v489, %v512
    %v537 = vmul.f32 %v493, %v511
    %v538 = vmul.f32 %v493, %v512
    %v539 = vmul.f32 %v497, %v511
    %v540 = vmul.f32 %v497, %v512
    %v541 = vmul.f32 %v501, %v511
    %v542 = vmul.f32 %v501, %v512
    %v543 = vmul.f32 %v505, %v511
    %v544 = vmul.f32 %v505, %v512
    %v545 = vadd.f32 %v411, %v513
    %v546 = vadd.f32 %v412, %v514
    %v547 = vadd.f32 %v413, %v515
    %v548 = vadd.f32 %v414, %v516
    %v549 = vadd.f32 %v415, %v517
    %v550 = vadd.f32 %v416, %v518
    %v551 = vadd.f32 %v417, %v519
    %v552 = vadd.f32 %v418, %v520
    %v553 = vadd.f32 %v419, %v521
    %v554 = vadd.f32 %v420, %v522
    %v555 = vadd.f32 %v421, %v523
    %v556 = vadd.f32 %v422, %v524
    %v557 = vadd.f32 %v423, %v525
    %v558 = vadd.f32 %v424, %v526
    %v559 = vadd.f32 %v425, %v527
    %v560 = vadd.f32 %v426, %v528
    %v561 = vadd.f32 %v427, %v529
    %v562 = vadd.f32 %v428, %v530
    %v563 = vadd.f32 %v429, %v531
    %v564 = vadd.f32 %v430, %v532
    %v565 = vadd.f32 %v431, %v533
    %v566 = vadd.f32 %v432, %v534
    %v567 = vadd.f32 %v433, %v535
    %v568 = vadd.f32 %v434, %v536
    %v569 = vadd.f32 %v435, %v537
    %v570 = vadd.f32 %v436, %v538
    %v571 = vadd.f32 %v437, %v539
    %v572 = vadd.f32 %v438, %v540
    %v573 = vadd.f32 %v439, %v541
    %v574 = vadd.f32 %v440, %v542
    %v575 = vadd.f32 %v441, %v543
    %v576 = vadd.f32 %v442, %v544
    %577 = vset.pattern.permute.xlu0 3
    %578 = vperm.xlu0 %577, %v46
    %v579 = vpop.permute.xlu0 %578
    %581 = vset.pattern.permute.xlu0 3
    %582 = vperm.xlu0 %581, %v47
    %v583 = vpop.permute.xlu0 %582
    %585 = vset.pattern.permute.xlu0 3
    %586 = vperm.xlu0 %585, %v48
    %v587 = vpop.permute.xlu0 %586
    %589 = vset.pattern.permute.xlu0 3
    %590 = vperm.xlu0 %589, %v49
    %v591 = vpop.permute.xlu0 %590
    %593 = vset.pattern.permute.xlu0 3
    %594 = vperm.xlu0 %593, %v50
    %v595 = vpop.permute.xlu0 %594
    %597 = vset.pattern.permute.xlu0 3
    %598 = vperm.xlu0 %597, %v51
    %v599 = vpop.permute.xlu0 %598
    %601 = vset.pattern.permute.xlu0 3
    %602 = vperm.xlu0 %601, %v52
    %v603 = vpop.permute.xlu0 %602
    %605 = vset.pattern.permute.xlu0 3
    %606 = vperm.xlu0 %605, %v53
    %v607 = vpop.permute.xlu0 %606
    %609 = vset.pattern.permute.xlu0 3
    %610 = vperm.xlu0 %609, %v54
    %v611 = vpop.permute.xlu0 %610
    %613 = vset.pattern.permute.xlu0 3
    %614 = vperm.xlu0 %613, %v55
    %v615 = vpop.permute.xlu0 %614
    %617 = vset.pattern.permute.xlu0 3
    %618 = vperm.xlu0 %617, %v56
    %v619 = vpop.permute.xlu0 %618
    %621 = vset.pattern.permute.xlu0 3
    %622 = vperm.xlu0 %621, %v57
    %v623 = vpop.permute.xlu0 %622
    %625 = vset.pattern.permute.xlu0 3
    %626 = vperm.xlu0 %625, %v58
    %v627 = vpop.permute.xlu0 %626
    %629 = vset.pattern.permute.xlu0 3
    %630 = vperm.xlu0 %629, %v59
    %v631 = vpop.permute.xlu0 %630
    %633 = vset.pattern.permute.xlu0 3
    %634 = vperm.xlu0 %633, %v60
    %v635 = vpop.permute.xlu0 %634
    %637 = vset.pattern.permute.xlu0 3
    %638 = vperm.xlu0 %637, %v61
    %v639 = vpop.permute.xlu0 %638
    %v641 = vperm.slane %v29, 3
    %v642 = vperm.slane %v29, 7
    %v645 = vperm.slane %v641, 3
    %v646 = vperm.slane %v642, 3
    %v647 = vmul.f32 %v579, %v645
    %v648 = vmul.f32 %v579, %v646
    %v649 = vmul.f32 %v583, %v645
    %v650 = vmul.f32 %v583, %v646
    %v651 = vmul.f32 %v587, %v645
    %v652 = vmul.f32 %v587, %v646
    %v653 = vmul.f32 %v591, %v645
    %v654 = vmul.f32 %v591, %v646
    %v655 = vmul.f32 %v595, %v645
    %v656 = vmul.f32 %v595, %v646
    %v657 = vmul.f32 %v599, %v645
    %v658 = vmul.f32 %v599, %v646
    %v659 = vmul.f32 %v603, %v645
    %v660 = vmul.f32 %v603, %v646
    %v661 = vmul.f32 %v607, %v645
    %v662 = vmul.f32 %v607, %v646
    %v663 = vmul.f32 %v611, %v645
    %v664 = vmul.f32 %v611, %v646
    %v665 = vmul.f32 %v615, %v645
    %v666 = vmul.f32 %v615, %v646
    %v667 = vmul.f32 %v619, %v645
    %v668 = vmul.f32 %v619, %v646
    %v669 = vmul.f32 %v623, %v645
    %v670 = vmul.f32 %v623, %v646
    %v671 = vmul.f32 %v627, %v645
    %v672 = vmul.f32 %v627, %v646
    %v673 = vmul.f32 %v631, %v645
    %v674 = vmul.f32 %v631, %v646
    %v675 = vmul.f32 %v635, %v645
    %v676 = vmul.f32 %v635, %v646
    %v677 = vmul.f32 %v639, %v645
    %v678 = vmul.f32 %v639, %v646
    %v679 = vadd.f32 %v545, %v647
    %v680 = vadd.f32 %v546, %v648
    %v681 = vadd.f32 %v547, %v649
    %v682 = vadd.f32 %v548, %v650
    %v683 = vadd.f32 %v549, %v651
    %v684 = vadd.f32 %v550, %v652
    %v685 = vadd.f32 %v551, %v653
    %v686 = vadd.f32 %v552, %v654
    %v687 = vadd.f32 %v553, %v655
    %v688 = vadd.f32 %v554, %v656
    %v689 = vadd.f32 %v555, %v657
    %v690 = vadd.f32 %v556, %v658
    %v691 = vadd.f32 %v557, %v659
    %v692 = vadd.f32 %v558, %v660
    %v693 = vadd.f32 %v559, %v661
    %v694 = vadd.f32 %v560, %v662
    %v695 = vadd.f32 %v561, %v663
    %v696 = vadd.f32 %v562, %v664
    %v697 = vadd.f32 %v563, %v665
    %v698 = vadd.f32 %v564, %v666
    %v699 = vadd.f32 %v565, %v667
    %v700 = vadd.f32 %v566, %v668
    %v701 = vadd.f32 %v567, %v669
    %v702 = vadd.f32 %v568, %v670
    %v703 = vadd.f32 %v569, %v671
    %v704 = vadd.f32 %v570, %v672
    %v705 = vadd.f32 %v571, %v673
    %v706 = vadd.f32 %v572, %v674
    %v707 = vadd.f32 %v573, %v675
    %v708 = vadd.f32 %v574, %v676
    %v709 = vadd.f32 %v575, %v677
    %v710 = vadd.f32 %v576, %v678
    %v711 = vmax.f32 %v679, 0.0
    %v712 = vmax.f32 %v680, 0.0
    %v713 = vmax.f32 %v681, 0.0
    %v714 = vmax.f32 %v682, 0.0
    %v715 = vmax.f32 %v683, 0.0
    %v716 = vmax.f32 %v684, 0.0
    %v717 = vmax.f32 %v685, 0.0
    %v718 = vmax.f32 %v686, 0.0
    %v719 = vmax.f32 %v687, 0.0
    %v720 = vmax.f32 %v688, 0.0
    %v721 = vmax.f32 %v689, 0.0
    %v722 = vmax.f32 %v690, 0.0
    %v723 = vmax.f32 %v691, 0.0
    %v724 = vmax.f32 %v692, 0.0
    %v725 = vmax.f32 %v693, 0.0
    %v726 = vmax.f32 %v694, 0.0
    %v727 = vmax.f32 %v695, 0.0
    %v728 = vmax.f32 %v696, 0.0
    %v729 = vmax.f32 %v697, 0.0
    %v730 = vmax.f32 %v698, 0.0
    %v731 = vmax.f32 %v699, 0.0
    %v732 = vmax.f32 %v700, 0.0
    %v733 = vmax.f32 %v701, 0.0
    %v734 = vmax.f32 %v702, 0.0
    %v735 = vmax.f32 %v703, 0.0
    %v736 = vmax.f32 %v704, 0.0
    %v737 = vmax.f32 %v705, 0.0
    %v738 = vmax.f32 %v706, 0.0
    %v739 = vmax.f32 %v707, 0.0
    %v740 = vmax.f32 %v708, 0.0
    %v741 = vmax.f32 %v709, 0.0
    %v742 = vmax.f32 %v710, 0.0
    %v743 = vld [vmem:[%s3] sm:$0xf]
    %v744 = vld [vmem:[%s3 + $0x4] sm:$0xf]
    %v745 = vld [vmem:[%s3 + $0x8] sm:$0xf]
    %v746 = vld [vmem:[%s3 + $0xc] sm:$0xf]
    %v747 = vld [vmem:[%s3 + $0x10] sm:$0xf]
    %v748 = vld [vmem:[%s3 + $0x14] sm:$0xf]
    %v749 = vld [vmem:[%s3 + $0x18] sm:$0xf]
    %v750 = vld [vmem:[%s3 + $0x1c] sm:$0xf]
    %v751 = vpack.c.bf16 %v713, %v711
    %v752 = vpack.c.bf16 %v714, %v712
    %v753 = vpack.c.bf16 %v717, %v715
    %v754 = vpack.c.bf16 %v718, %v716
    %v755 = vpack.c.bf16 %v721, %v719
    %v756 = vpack.c.bf16 %v722, %v720
    %v757 = vpack.c.bf16 %v725, %v723
    %v758 = vpack.c.bf16 %v726, %v724
    %v759 = vpack.c.bf16 %v729, %v727
    %v760 = vpack.c.bf16 %v730, %v728
    %v761 = vpack.c.bf16 %v733, %v731
    %v762 = vpack.c.bf16 %v734, %v732
    %v763 = vpack.c.bf16 %v737, %v735
    %v764 = vpack.c.bf16 %v738, %v736
    %v765 = vpack.c.bf16 %v741, %v739
    %v766 = vpack.c.bf16 %v742, %v740
    %v767 = vld [vmem:[%s4] sm:$0xff]
    %v768 = vld [vmem:[%s4 + $0x8] sm:$0xff]
    %v769 = vld [vmem:[%s4 + $0x10] sm:$0xff]
    %v770 = vld [vmem:[%s4 + $0x18] sm:$0xff]
    %v771 = vld [vmem:[%s4 + $0x20] sm:$0xff]
    %v772 = vld [vmem:[%s4 + $0x28] sm:$0xff]
    %v773 = vld [vmem:[%s4 + $0x30] sm:$0xff]
    %v774 = vld [vmem:[%s4 + $0x38] sm:$0xff]
    %776 = vset.pattern.permute.xlu0 0
    %777 = vperm.xlu0 %776, %v767
    %v778 = vpop.permute.xlu0 %777
    %781 = vset.pattern.permute.xlu0 0
    %782 = vperm.xlu0 %781, %v768
    %v783 = vpop.permute.xlu0 %782
    %786 = vset.pattern.permute.xlu0 0
    %787 = vperm.xlu0 %786, %v769
    %v788 = vpop.permute.xlu0 %787
    %791 = vset.pattern.permute.xlu0 0
    %792 = vperm.xlu0 %791, %v770
    %v793 = vpop.permute.xlu0 %792
    %796 = vset.pattern.permute.xlu0 0
    %797 = vperm.xlu0 %796, %v771
    %v798 = vpop.permute.xlu0 %797
    %801 = vset.pattern.permute.xlu0 0
    %802 = vperm.xlu0 %801, %v772
    %v803 = vpop.permute.xlu0 %802
    %806 = vset.pattern.permute.xlu0 0
    %807 = vperm.xlu0 %806, %v773
    %v808 = vpop.permute.xlu0 %807
    %811 = vset.pattern.permute.xlu0 0
    %812 = vperm.xlu0 %811, %v774
    %v813 = vpop.permute.xlu0 %812
    %v823 = vunpack.c.l.b16 %v743
    %v824 = vunpack.c.l.b16 %v744
    %v825 = vunpack.c.l.b16 %v745
    %v826 = vunpack.c.l.b16 %v746
    %v827 = vunpack.c.l.b16 %v747
    %v828 = vunpack.c.l.b16 %v748
    %v829 = vunpack.c.l.b16 %v749
    %v830 = vunpack.c.l.b16 %v750
    %v831 = vpack.c.b16 %v824, %v823
    %v832 = vpack.c.b16 %v826, %v825
    %v833 = vpack.c.b16 %v828, %v827
    %v834 = vpack.c.b16 %v830, %v829
    %839 = vmatpush.bf16.msra.mxu0 %v765
    %840 = vmatpush.bf16.msra.mxu0 %v763
    %841 = vmatpush.bf16.msra.mxu0 %v761
    %842 = vmatpush.bf16.msra.mxu0 %v759
    %843 = vmatpush.bf16.msra.mxu0 %v757
    %844 = vmatpush.bf16.msra.mxu0 %v755
    %845 = vmatpush.bf16.msra.mxu0 %v753
    %846 = vmatpush.bf16.msra.mxu0 %v751
    %847 = vmatmul.bf16.gmra.mxu0 %v831
    %v848 = vpop.f32.mrf.mxu0
    %v849 = vadd.f32 %v778, %v848
    %v850 = vpop.f32.mrf.mxu0
    %v851 = vadd.f32 %v783, %v850
    %852 = vmatmul.bf16.gmra.mxu0 %v832
    %v853 = vpop.f32.mrf.mxu0
    %v854 = vadd.f32 %v788, %v853
    %v855 = vpop.f32.mrf.mxu0
    %v856 = vadd.f32 %v793, %v855
    %857 = vmatmul.bf16.gmra.mxu0 %v833
    %v858 = vpop.f32.mrf.mxu0
    %v859 = vadd.f32 %v798, %v858
    %v860 = vpop.f32.mrf.mxu0
    %v861 = vadd.f32 %v803, %v860
    %862 = vmatmul.bf16.gmra.mxu0 %v834
    %v863 = vpop.f32.mrf.mxu0
    %v864 = vadd.f32 %v808, %v863
    %v865 = vpop.f32.mrf.mxu0
    %v866 = vadd.f32 %v813, %v865
    %867 = vdwg.mxu0
    %868 = vmatpush.bf16.msra.mxu0 %v766
    %869 = vmatpush.bf16.msra.mxu0 %v764
    %870 = vmatpush.bf16.msra.mxu0 %v762
    %871 = vmatpush.bf16.msra.mxu0 %v760
    %872 = vmatpush.bf16.msra.mxu0 %v758
    %873 = vmatpush.bf16.msra.mxu0 %v756
    %874 = vmatpush.bf16.msra.mxu0 %v754
    %875 = vmatpush.bf16.msra.mxu0 %v752
    %876 = vmatmul.bf16.gmra.mxu0 %v831
    %v877 = vpop.f32.mrf.mxu0
    %v878 = vadd.f32 %v778, %v877
    %v879 = vpop.f32.mrf.mxu0
    %v880 = vadd.f32 %v783, %v879
    %881 = vmatmul.bf16.gmra.mxu0 %v832
    %v882 = vpop.f32.mrf.mxu0
    %v883 = vadd.f32 %v788, %v882
    %v884 = vpop.f32.mrf.mxu0
    %v885 = vadd.f32 %v793, %v884
    %886 = vmatmul.bf16.gmra.mxu0 %v833
    %v887 = vpop.f32.mrf.mxu0
    %v888 = vadd.f32 %v798, %v887
    %v889 = vpop.f32.mrf.mxu0
    %v890 = vadd.f32 %v803, %v889
    %891 = vmatmul.bf16.gmra.mxu0 %v834
    %v892 = vpop.f32.mrf.mxu0
    %v893 = vadd.f32 %v808, %v892
    %v894 = vpop.f32.mrf.mxu0
    %v895 = vadd.f32 %v813, %v894
    %896 = vdwg.mxu0
    %v897 = vmax.f32 %v849, 0.0
    %v898 = vmax.f32 %v878, 0.0
    %v899 = vmax.f32 %v851, 0.0
    %v900 = vmax.f32 %v880, 0.0
    %v901 = vmax.f32 %v854, 0.0
    %v902 = vmax.f32 %v883, 0.0
    %v903 = vmax.f32 %v856, 0.0
    %v904 = vmax.f32 %v885, 0.0
    %v905 = vmax.f32 %v859, 0.0
    %v906 = vmax.f32 %v888, 0.0
    %v907 = vmax.f32 %v861, 0.0
    %v908 = vmax.f32 %v890, 0.0
    %v909 = vmax.f32 %v864, 0.0
    %v910 = vmax.f32 %v893, 0.0
    %v911 = vmax.f32 %v866, 0.0
    %v912 = vmax.f32 %v895, 0.0
    %v913 = vld [vmem:[%s5] sm:$0xff]
    %v914 = vld [vmem:[%s5 + $0x8] sm:$0xff]
    %v915 = vld [vmem:[%s5 + $0x10] sm:$0xff]
    %v916 = vld [vmem:[%s5 + $0x18] sm:$0xff]
    %v917 = vld [vmem:[%s5 + $0x20] sm:$0xff]
    %v918 = vld [vmem:[%s5 + $0x28] sm:$0xff]
    %v919 = vld [vmem:[%s5 + $0x30] sm:$0xff]
    %v920 = vld [vmem:[%s5 + $0x38] sm:$0xff]
    %922 = vset.pattern.permute.xlu0 0
    %923 = vperm.xlu0 %922, %v913
    %v924 = vpop.permute.xlu0 %923
    %927 = vset.pattern.permute.xlu0 0
    %928 = vperm.xlu0 %927, %v914
    %v929 = vpop.permute.xlu0 %928
    %932 = vset.pattern.permute.xlu0 0
    %933 = vperm.xlu0 %932, %v915
    %v934 = vpop.permute.xlu0 %933
    %937 = vset.pattern.permute.xlu0 0
    %938 = vperm.xlu0 %937, %v916
    %v939 = vpop.permute.xlu0 %938
    %942 = vset.pattern.permute.xlu0 0
    %943 = vperm.xlu0 %942, %v917
    %v944 = vpop.permute.xlu0 %943
    %947 = vset.pattern.permute.xlu0 0
    %948 = vperm.xlu0 %947, %v918
    %v949 = vpop.permute.xlu0 %948
    %952 = vset.pattern.permute.xlu0 0
    %953 = vperm.xlu0 %952, %v919
    %v954 = vpop.permute.xlu0 %953
    %957 = vset.pattern.permute.xlu0 0
    %958 = vperm.xlu0 %957, %v920
    %v959 = vpop.permute.xlu0 %958
    %v961 = vmul.f32 %v897, %v924
    %v962 = vmul.f32 %v898, %v924
    %v963 = vmul.f32 %v899, %v929
    %v964 = vmul.f32 %v900, %v929
    %v965 = vmul.f32 %v901, %v934
    %v966 = vmul.f32 %v902, %v934
    %v967 = vmul.f32 %v903, %v939
    %v968 = vmul.f32 %v904, %v939
    %v969 = vmul.f32 %v905, %v944
    %v970 = vmul.f32 %v906, %v944
    %v971 = vmul.f32 %v907, %v949
    %v972 = vmul.f32 %v908, %v949
    %v973 = vmul.f32 %v909, %v954
    %v974 = vmul.f32 %v910, %v954
    %v975 = vmul.f32 %v911, %v959
    %v976 = vmul.f32 %v912, %v959
    %v977 = vadd.f32 %v961, %v963
    %v978 = vadd.f32 %v977, %v965
    %v979 = vadd.f32 %v978, %v967
    %v980 = vadd.f32 %v979, %v969
    %v981 = vadd.f32 %v980, %v971
    %v982 = vadd.f32 %v981, %v973
    %v983 = vadd.f32 %v982, %v975
    %v984 = vrot.slane %v983, 4
    %v985 = vadd.f32 %v983, %v984
    %v986 = vrot.slane %v985, 2
    %v987 = vadd.f32 %v985, %v986
    %v988 = vrot.slane %v987, 1
    %v989 = vadd.f32 %v987, %v988
    %v990 = vadd.f32 %v962, %v964
    %v991 = vadd.f32 %v990, %v966
    %v992 = vadd.f32 %v991, %v968
    %v993 = vadd.f32 %v992, %v970
    %v994 = vadd.f32 %v993, %v972
    %v995 = vadd.f32 %v994, %v974
    %v996 = vadd.f32 %v995, %v976
    %v997 = vrot.slane %v996, 4
    %v998 = vadd.f32 %v996, %v997
    %v999 = vrot.slane %v998, 2
    %v1000 = vadd.f32 %v998, %v999
    %v1001 = vrot.slane %v1000, 1
    %v1002 = vadd.f32 %v1000, %v1001
    %s1003 = sld [smem:[#allocation2]]
    %v1004 = vstv %s1003
    %v1005 = vadd.f32 %v989, %v1004
    %v1006 = vadd.f32 %v1002, %v1004
    %v1009 = vrot.slane %v1006, 7
    %vm1010 = vcmask 1040384
    %v1011 = vsel %vm1010, %v1005, %v1009
    %v1013 = vlaneseq
    %vm1014 = vcmp.ge.s32.totalorder %v1013, 0
    %vm1015 = vcmp.lt.s32.totalorder %v1013, 256
    %vm1016 = vmand %vm1014, %vm1015
    %1017 = vst.msk [vmem:[#allocation3] sm:$0x3] %vm1016, %v1011
    // Predicated region
    $region30: #{tpu_custom_call.1} parent=1 // pred_check
      _
    $region31: #{tpu_custom_call.1} parent=1 // pred_check_branch
      %1019 = sbr.rel (0) target = $region33
    $region32: #{tpu_custom_call.1} parent=1 // pred_region
      %1021 = vsyncadd [#allocation4], 0
      %s1023 = sshll.u32 [#allocation3], 4
      %s1024 = int_to_ptr.vmem [resolvable:$true] %s1023
      %s1025 = sshll.u32 %s7, 4
      %s1026 = int_to_ptr.hbm [resolvable:$true] %s1025
      %1028 = dma.vmem_to_hbm [thread:$0]  %s1024, 32, %s1026, [#allocation4]
    $region33: #{tpu_custom_call.1} parent=1 // pred_fallthru
      _
    // Predicated region
    $region34: #{tpu_custom_call.1} parent=1 // pred_check
      _
    $region35: #{tpu_custom_call.1} parent=1 // pred_check_branch
      %1030 = sbr.rel (0) target = $region37
    $region36: #{tpu_custom_call.1} parent=1 // pred_region
      %1032 = dma.done [#allocation4], 32
    $region37: #{tpu_custom_call.1} parent=1 // pred_fallthru
      _
    %1033 = vsyncpa [#allocation4], 1

</llo_original>
